<compile_context>
chip_gen: v6e
topology: v6e:2x2x1
jax: 0.10.0
libtpu: 0.0.40
codegen_flags: <defaults>
</compile_context>

<pallas_src>
import functools
import math

import jax
import jax.numpy as jnp
from jax.experimental import pallas as pl
from jax.experimental.pallas import tpu as pltpu


def _round_up(n, m):
    return ((n + m - 1) // m) * m


def _pad_lanes(a, width):
    """Zero-pad the last (lane) dim of `a` up to `width` (static)."""
    pad = width - a.shape[-1]
    if pad == 0:
        return a
    return jnp.concatenate(
        [a, jnp.zeros(a.shape[:-1] + (pad,), a.dtype)], axis=-1)


def _avg_attention_kernel(x_ref, w_ref, b_ref, out_ref, *, compute_dtype):
    # Everything resident in VMEM (working set is a few KiB); single invocation.
    B, S, V = x_ref.shape
    d_k = w_ref.shape[1] // 3
    inv_sqrt_dk = 1.0 / math.sqrt(float(d_k))
    z_w = B * d_k
    z_pad = _round_up(z_w, 128)
    s_pad = out_ref.shape[1] - z_pad

    x = x_ref[...]                                    # (B, S, V) f32
    xbar = jnp.mean(x, axis=1)                        # (B, V) f32  -- exact mean hoist

    # One fused projection matmul on the MXU: [x rows ; xbar rows] @ [Wq|Wk|Wv]^T.
    rows = jnp.concatenate([x.reshape(B * S, V), xbar], axis=0)   # (B*S+B, V)
    rows = rows.astype(compute_dtype)
    proj = jnp.dot(rows, w_ref[...],
                   preferred_element_type=jnp.float32)            # f32 accumulation
    proj = proj + b_ref[...]                                      # (B*S+B, 3*d_k) f32

    k = proj[:B * S, d_k:2 * d_k].reshape(B, S, d_k)              # (B, S, d_k)
    v = proj[:B * S, 2 * d_k:3 * d_k].reshape(B, S, d_k)          # (B, S, d_k)
    qbar = proj[B * S:, :d_k] * inv_sqrt_dk                       # (B, d_k), scale folded

    # scores[b, j] = mean_i(q[b,i]·k[b,j]) / sqrt(d_k) = qbar[b]·k[b,j]
    s = jnp.sum(qbar[:, None, :] * k, axis=-1)                    # (B, S) f32 (VPU+XLU)

    # softmax over the key axis; approx reciprocal goes to the (idle) EUP slot.
    m = jnp.max(s, axis=-1, keepdims=True)
    e = jnp.exp(s - m)
    p = e * pl.reciprocal(jnp.sum(e, axis=-1, keepdims=True), approx=True)

    # torch.matmul((B,S), (B,S,d_k)) broadcasting quirk:
    #   z[b, i, d] = sum_s p[i, s] * v[b, s, d]   ->   (B, B, d_k)
    z = jnp.einsum('is,bsd->bid',
                   p.astype(compute_dtype), v.astype(compute_dtype),
                   preferred_element_type=jnp.float32)

    # Lane-dense combined output slab: [ z rows flattened (B*d_k) | scores padded ].
    z_flat = jnp.concatenate([z[:, i, :] for i in range(B)], axis=-1)  # (B, B*d_k)
    out_ref[...] = jnp.concatenate(
        [_pad_lanes(z_flat, z_pad), _pad_lanes(p, s_pad)], axis=-1)


def average_attention(x, wq, bq, wk, bk, wv, bv, *, matmul_dtype=jnp.bfloat16):
    """x: (B,S,V) f32; weights (d_k,V), biases (d_k,). Returns (z (B,B,d_k), scores (B,S))."""
    B, S, V = x.shape
    d_k = wq.shape[0]
    z_w = B * d_k
    z_pad = _round_up(z_w, 128)
    s_pad = _round_up(S, 128)

    # Pack the three Linear layers: one (V, 3*d_k) weight, one (1, 3*d_k) bias.
    w_packed = jnp.concatenate([wq, wk, wv], axis=0).T.astype(matmul_dtype)
    b_packed = jnp.concatenate([bq, bk, bv]).reshape(1, 3 * d_k).astype(jnp.float32)

    vmem = pl.BlockSpec(memory_space=pltpu.MemorySpace.VMEM)
    kernel = functools.partial(_avg_attention_kernel, compute_dtype=matmul_dtype)

    slab = pl.pallas_call(
        kernel,
        out_shape=jax.ShapeDtypeStruct((B, z_pad + s_pad), jnp.float32),
        in_specs=[vmem, vmem, vmem],
        out_specs=vmem,
    )(x.astype(jnp.float32), w_packed, b_packed)

    # Layout plumbing only (tiny slices in the wrapper).
    z = slab[:, :z_w].reshape(B, B, d_k)          # z[b, i, d]
    scores = slab[:, z_pad:z_pad + S]
    return z, scores


def _reference(x, wq, bq, wk, bk, wv, bv):
    """Pure-JAX mirror of the PyTorch forward (f32)."""
    d_k = wq.shape[0]
    q = x @ wq.T + bq
    k = x @ wk.T + bk
    v = x @ wv.T + bv
    s = jnp.einsum('bqd,bkd->bqk', q, k)
    scores = jnp.mean(s, axis=1) / jnp.sqrt(jnp.float32(d_k))
    scores = jax.nn.softmax(scores, axis=-1)
    z = jnp.einsum('is,bsd->bid', scores, v)      # == torch.matmul((B,S),(B,S,d_k))
    return z, scores


if __name__ == "__main__":
    B, S, VEC_DIM, D_K = 2, 8, 32, 64

    key = jax.random.PRNGKey(0)
    kx, kwq, kbq, kwk, kbk, kwv, kbv = jax.random.split(key, 7)

    x = jax.random.normal(kx, (B, S, VEC_DIM), dtype=jnp.float32)

    # PyTorch nn.Linear default init: U(-1/sqrt(fan_in), +1/sqrt(fan_in)).
    bound = 1.0 / math.sqrt(VEC_DIM)
    def uinit(k, shape):
        return jax.random.uniform(k, shape, jnp.float32, -bound, bound)

    wq, bq = uinit(kwq, (D_K, VEC_DIM)), uinit(kbq, (D_K,))
    wk, bk = uinit(kwk, (D_K, VEC_DIM)), uinit(kbk, (D_K,))
    wv, bv = uinit(kwv, (D_K, VEC_DIM)), uinit(kbv, (D_K,))

    z_ref, s_ref = _reference(x, wq, bq, wk, bk, wv, bv)

    # f32 MXU path: tight check (only approx-reciprocal + reassociation error).
    z32, s32 = average_attention(x, wq, bq, wk, bk, wv, bv,
                                 matmul_dtype=jnp.float32)
    jax.block_until_ready((z32, s32))
    assert z32.shape == (B, B, D_K) and s32.shape == (B, S)
    assert jnp.allclose(z32, z_ref, atol=3e-3, rtol=3e-3)
    assert jnp.allclose(s32, s_ref, atol=3e-3, rtol=3e-3)

    # bf16 MXU path (v6e/v7x fast path, f32 accumulation): looser tolerance.
    zbf, sbf = average_attention(x, wq, bq, wk, bk, wv, bv,
                                 matmul_dtype=jnp.bfloat16)
    jax.block_until_ready((zbf, sbf))
    assert zbf.shape == (B, B, D_K) and sbf.shape == (B, S)
    assert jnp.allclose(zbf, z_ref, atol=5e-2, rtol=5e-2)
    assert jnp.allclose(sbf, s_ref, atol=5e-2, rtol=5e-2)

    print("KERNEL_OK")
</pallas_src>

<mosaic_0001>
module attributes {stable_mosaic.version = 11 : i64} {
  func.func @_avg_attention_kernel(%arg0: memref<2x8x32xf32, #tpu.memory_space<vmem>>, %arg1: memref<32x192xf32, #tpu.memory_space<vmem>>, %arg2: memref<1x192xf32, #tpu.memory_space<vmem>>, %arg3: memref<2x256xf32, #tpu.memory_space<vmem>>) attributes {dimension_semantics = [], scalar_prefetch = 0 : i64, scratch_operands = 0 : i64, tpu.core_type = #tpu.core_type<tc>} {
    %c0 = arith.constant 0 : index
    %c0_0 = arith.constant 0 : index
    %c0_1 = arith.constant 0 : index
    %0 = vector.load %arg0[%c0, %c0_0, %c0_1] : memref<2x8x32xf32, #tpu.memory_space<vmem>>, vector<2x8x32xf32>
    %cst = arith.constant dense<0.000000e+00> : vector<2x32xf32>
    %1 = vector.multi_reduction <add>, %0, %cst [1] : vector<2x8x32xf32> to vector<2x32xf32>
    %cst_2 = arith.constant 8.000000e+00 : f32
    %2 = vector.broadcast %cst_2 : f32 to vector<2x32xf32>
    %3 = arith.divf %1, %2 : vector<2x32xf32>
    %4 = vector.shape_cast %0 : vector<2x8x32xf32> to vector<16x32xf32>
    %5 = tpu.concatenate %4, %3 in 0 : vector<16x32xf32>, vector<2x32xf32> -> vector<18x32xf32>
    %c0_3 = arith.constant 0 : index
    %c0_4 = arith.constant 0 : index
    %6 = vector.load %arg1[%c0_3, %c0_4] : memref<32x192xf32, #tpu.memory_space<vmem>>, vector<32x192xf32>
    %cst_5 = arith.constant dense<0.000000e+00> : vector<18x192xf32>
    %7 = tpu.matmul %5, %6, %cst_5 {dimension_numbers = #tpu.dot_dimension_numbers<[1], [0], [0], [1], [0, 0, 1, 1], [], []>} : vector<18x32xf32>, vector<32x192xf32>, vector<18x192xf32> -> vector<18x192xf32>
    %c0_6 = arith.constant 0 : index
    %c0_7 = arith.constant 0 : index
    %8 = vector.load %arg2[%c0_6, %c0_7] : memref<1x192xf32, #tpu.memory_space<vmem>>, vector<1x192xf32>
    %9 = vector.broadcast %8 : vector<1x192xf32> to vector<18x192xf32>
    %10 = arith.addf %7, %9 : vector<18x192xf32>
    %11 = vector.extract_strided_slice %10 {offsets = [0, 64], sizes = [16, 64], strides = [1, 1]} : vector<18x192xf32> to vector<16x64xf32>
    %12 = vector.shape_cast %11 : vector<16x64xf32> to vector<2x8x64xf32>
    %13 = vector.extract_strided_slice %10 {offsets = [0, 128], sizes = [16, 64], strides = [1, 1]} : vector<18x192xf32> to vector<16x64xf32>
    %14 = vector.shape_cast %13 : vector<16x64xf32> to vector<2x8x64xf32>
    %15 = vector.extract_strided_slice %10 {offsets = [16, 0], sizes = [2, 64], strides = [1, 1]} : vector<18x192xf32> to vector<2x64xf32>
    %cst_8 = arith.constant 1.250000e-01 : f32
    %16 = vector.broadcast %cst_8 : f32 to vector<2x64xf32>
    %17 = arith.mulf %15, %16 : vector<2x64xf32>
    %18 = vector.shape_cast %17 : vector<2x64xf32> to vector<2x1x64xf32>
    %19 = vector.broadcast %18 : vector<2x1x64xf32> to vector<2x8x64xf32>
    %20 = arith.mulf %19, %12 : vector<2x8x64xf32>
    %cst_9 = arith.constant dense<0.000000e+00> : vector<2x8xf32>
    %21 = vector.multi_reduction <add>, %20, %cst_9 [2] : vector<2x8x64xf32> to vector<2x8xf32>
    %cst_10 = arith.constant dense<0xFF800000> : vector<2xf32>
    %22 = vector.multi_reduction <maximumf>, %21, %cst_10 [1] : vector<2x8xf32> to vector<2xf32>
    %23 = vector.shape_cast %22 : vector<2xf32> to vector<2x1xf32>
    %24 = vector.broadcast %23 : vector<2x1xf32> to vector<2x8xf32>
    %25 = arith.subf %21, %24 : vector<2x8xf32>
    %26 = math.exp %25 : vector<2x8xf32>
    %cst_11 = arith.constant dense<0.000000e+00> : vector<2xf32>
    %27 = vector.multi_reduction <add>, %26, %cst_11 [1] : vector<2x8xf32> to vector<2xf32>
    %28 = vector.shape_cast %27 : vector<2xf32> to vector<2x1xf32>
    %29 = tpu.reciprocal %28 {approx = true} : vector<2x1xf32> -> vector<2x1xf32>
    %30 = vector.broadcast %29 : vector<2x1xf32> to vector<2x8xf32>
    %31 = arith.mulf %26, %30 : vector<2x8xf32>
    "tpu.trace_start"() <{level = 10 : i32, message = "is,bsd->bid"}> : () -> ()
    %cst_12 = arith.constant dense<0.000000e+00> : vector<2x64x2xf32>
    %32 = tpu.matmul %14, %31, %cst_12 {dimension_numbers = #tpu.dot_dimension_numbers<[1], [1], [0, 2], [0], [0, 0, 0, 2, 1, 0], [], []>} : vector<2x8x64xf32>, vector<2x8xf32>, vector<2x64x2xf32> -> vector<2x64x2xf32>
    %33 = tpu.transpose %32, [0, 2, 1] : vector<2x64x2xf32> -> vector<2x2x64xf32>
    "tpu.trace_stop"() : () -> ()
    %34 = vector.extract_strided_slice %33 {offsets = [0, 0, 0], sizes = [2, 1, 64], strides = [1, 1, 1]} : vector<2x2x64xf32> to vector<2x1x64xf32>
    %35 = vector.shape_cast %34 : vector<2x1x64xf32> to vector<2x64xf32>
    %36 = vector.extract_strided_slice %33 {offsets = [0, 1, 0], sizes = [2, 1, 64], strides = [1, 1, 1]} : vector<2x2x64xf32> to vector<2x1x64xf32>
    %37 = vector.shape_cast %36 : vector<2x1x64xf32> to vector<2x64xf32>
    %38 = tpu.concatenate %35, %37 in 1 : vector<2x64xf32>, vector<2x64xf32> -> vector<2x128xf32>
    %cst_13 = arith.constant 0.000000e+00 : f32
    %39 = vector.broadcast %cst_13 : f32 to vector<2x120xf32>
    %40 = tpu.concatenate %31, %39 in 1 : vector<2x8xf32>, vector<2x120xf32> -> vector<2x128xf32>
    %41 = tpu.concatenate %38, %40 in 1 : vector<2x128xf32>, vector<2x128xf32> -> vector<2x256xf32>
    %c0_14 = arith.constant 0 : index
    %c0_15 = arith.constant 0 : index
    %42 = vector.load %arg3[%c0_14, %c0_15] : memref<2x256xf32, #tpu.memory_space<vmem>>, vector<2x256xf32>
    tpu.vector_store %arg3[%c0_14, %c0_15], %41 {strides = array<i32>} : memref<2x256xf32, #tpu.memory_space<vmem>>, vector<2x256xf32>,
    return
  }
}

</mosaic_0001>

<llo_original>
// kernel: tpu_custom_call.1
$region0: #{tpu_custom_call.1}
  #allocation0 [shape = 'u32[]', space=smem, size = 0x4, offset = 0x4, fixed_abs, tag = 'smem constant byte address 0x4 - core index']
  #allocation1 [shape = 'u32[144,128]{1,0:T(1,128)}', space=vmem, size = 0x12000, scoped, tag = 'internal scratch']
  %s0 = inlined_call_operand.hbm [shape: f32[2,8,32], index: 0, kind: input, shape index: {}]
  %s1 = inlined_call_operand.hbm [shape: f32[32,192], index: 1, kind: input, shape index: {}]
  %s2 = inlined_call_operand.vmem [shape: f32[1,192], index: 2, kind: input, shape index: {}]
  %s3 = inlined_call_operand.hbm [shape: f32[2,256], index: 3, kind: output, shape index: {}]
  %s4 = sld [smem:[#allocation0]]
  $region30: #{tpu_custom_call.1} parent=0
    _
  %s6 = ssub.s32 1, %s4
  %s7 = scalar_select 0, %s6, %s4
  $region1: #{tpu_custom_call.1} parent=0
    #allocation2 [shape = 'u8[8192]{0}', space=vmem, size = 0x2000, scoped, tag = 'input window, operand 0, single buffered']
    #allocation3 [shape = 's32[1]{0}', space=sflag, size = 0x4, scoped, tag = 'scoped memory for tpu_custom_call.1']
    #allocation4 [shape = 's32[1]{0}', space=sflag, size = 0x4, scoped, tag = 'scoped memory for tpu_custom_call.1']
    #allocation5 [shape = 'u8[32768]{0}', space=vmem, size = 0x8000, scoped, tag = 'input window, operand 1, single buffered']
    #allocation6 [shape = 's32[1]{0}', space=sflag, size = 0x4, scoped, tag = 'scoped memory for tpu_custom_call.1']
    #allocation7 [shape = 'u8[2048]{0}', space=vmem, size = 0x800, scoped, tag = 'output window, operand 0, single buffered']
    %8 = vsyncpa [#allocation3], 0
    %9 = vsyncpa [#allocation6], 0
    %10 = vsyncpa [#allocation4], 0
    // Predicated region
    $region2: #{tpu_custom_call.1} parent=1 // pred_check
      _
    $region3: #{tpu_custom_call.1} parent=1 // pred_check_branch
      %12 = sbr.rel (0) target = $region5
    $region4: #{tpu_custom_call.1} parent=1 // pred_region
      %s14 = ssub.s32 256, 256
      %15 = vsyncadd [#allocation3], %s14
      %s16 = sshll.u32 [#allocation2], 4
      %s17 = int_to_ptr.vmem [resolvable:$true] %s16
      %22 = dma.hbm_to_vmem [thread:$0]  %s0, 256, %s17, [#allocation3], 128, 128, 8
    $region5: #{tpu_custom_call.1} parent=1 // pred_fallthru
      _
    // Predicated region
    $region6: #{tpu_custom_call.1} parent=1 // pred_check
      _
    $region7: #{tpu_custom_call.1} parent=1 // pred_check_branch
      %24 = sbr.rel (0) target = $region9
    $region8: #{tpu_custom_call.1} parent=1 // pred_region
      %s26 = ssub.s32 1024, 1024
      %27 = vsyncadd [#allocation6], %s26
      %s28 = sshll.u32 [#allocation5], 4
      %s29 = int_to_ptr.vmem [resolvable:$true] %s28
      %34 = dma.hbm_to_vmem [thread:$0]  %s1, 1024, %s29, [#allocation6], 256, 256, 16
    $region9: #{tpu_custom_call.1} parent=1 // pred_fallthru
      _
    // Predicated region
    $region10: #{tpu_custom_call.1} parent=1 // pred_check
      _
    $region11: #{tpu_custom_call.1} parent=1 // pred_check_branch
      %36 = sbr.rel (0) target = $region13
    $region12: #{tpu_custom_call.1} parent=1 // pred_region
      _
    $region13: #{tpu_custom_call.1} parent=1 // pred_fallthru
      _
    // Predicated region
    $region14: #{tpu_custom_call.1} parent=1 // pred_check
      _
    $region15: #{tpu_custom_call.1} parent=1 // pred_check_branch
      %38 = sbr.rel (0) target = $region17
    $region16: #{tpu_custom_call.1} parent=1 // pred_region
      %39 = dma.done [#allocation3], 256
    $region17: #{tpu_custom_call.1} parent=1 // pred_fallthru
      _
    // Predicated region
    $region18: #{tpu_custom_call.1} parent=1 // pred_check
      _
    $region19: #{tpu_custom_call.1} parent=1 // pred_check_branch
      %41 = sbr.rel (0) target = $region21
    $region20: #{tpu_custom_call.1} parent=1 // pred_region
      %42 = dma.done [#allocation6], 1024
    $region21: #{tpu_custom_call.1} parent=1 // pred_fallthru
      _
    %v43 = vld [vmem:[#allocation2] sm:$0xff]
    %v44 = vld [vmem:[#allocation2 + $0x8] sm:$0xff]
    %vm45 = vcmask 261120
    %v46 = vsel %vm45, %v43, 0.0
    %v47 = vrot.slane %v46, 4
    %v48 = vadd.f32 %v46, %v47
    %v49 = vrot.slane %v48, 2
    %v50 = vadd.f32 %v48, %v49
    %v51 = vrot.slane %v50, 1
    %v52 = vadd.f32 %v50, %v51
    %v53 = vsel %vm45, %v44, 0.0
    %v54 = vrot.slane %v53, 4
    %v55 = vadd.f32 %v53, %v54
    %v56 = vrot.slane %v55, 2
    %v57 = vadd.f32 %v55, %v56
    %v58 = vrot.slane %v57, 1
    %v59 = vadd.f32 %v57, %v58
    %v60 = vrcp.pop 8.0
    %v61 = vmul.f32 %v52, %v60
    %v62 = vmul.f32 %v59, %v60
    %vm65 = vcmask 1041409
    %v66 = vsel %vm65, %v62, %v61
    %v67 = vld [vmem:[#allocation5] sm:$0xff]
    %v68 = vld [vmem:[#allocation5 + $0x8] sm:$0xff]
    %v69 = vld [vmem:[#allocation5 + $0x10] sm:$0xff]
    %v70 = vld [vmem:[#allocation5 + $0x18] sm:$0xff]
    %v71 = vld [vmem:[#allocation5 + $0x20] sm:$0xff]
    %v72 = vld [vmem:[#allocation5 + $0x28] sm:$0xff]
    %v73 = vld [vmem:[#allocation5 + $0x30] sm:$0xff]
    %v74 = vld [vmem:[#allocation5 + $0x38] sm:$0xff]
    %v75 = vld [vmem:[%s2] sm:$0x3]
    %v77 = vlaneseq
    %v78 = vshrl.u32 %v77, 7
    %v79 = vsub.s32 0, %v78
    %v80 = vrot.slane %v75, %v79
    %v81 = vlaneseq
    %v82 = vshrl.u32 %v81, 7
    %v83 = vsub.s32 1, %v82
    %v84 = vrot.slane %v75, %v83
    %v88 = vsel %vm45, %v43, 0
    %v91 = vsel %vm45, %v44, 0
    %v93 = vsel %vm45, %v66, 0
    %95 = vmatprep.subr.mxu0 0.0
    %96 = vmatpush1.msra.mxu0 0.0
    %97 = vmatprep.subr.mxu0 0.0
    %98 = vmatpush1.msra.mxu0 0.0
    %99 = vmatprep.subr.mxu0 0.0
    %100 = vmatpush1.msra.mxu0 0.0
    %101 = vmatprep.subr.mxu0 0.0
    %102 = vmatpush1.msra.mxu0 0.0
    %103 = vmatprep.subr.mxu0 0.0
    %104 = vmatpush1.msra.mxu0 0.0
    %105 = vmatprep.subr.mxu0 0.0
    %106 = vmatpush1.msra.mxu0 0.0
    %107 = vmatprep.subr.mxu0 0.0
    %108 = vmatpush1.msra.mxu0 0.0
    %109 = vmatprep.subr.mxu0 0.0
    %110 = vmatpush1.msra.mxu0 0.0
    %111 = vmatprep.subr.mxu0 0.0
    %112 = vmatpush1.msra.mxu0 0.0
    %113 = vmatprep.subr.mxu0 0.0
    %114 = vmatpush1.msra.mxu0 0.0
    %115 = vmatprep.subr.mxu0 0.0
    %116 = vmatpush1.msra.mxu0 0.0
    %117 = vmatprep.subr.mxu0 0.0
    %118 = vmatpush1.msra.mxu0 0.0
    %119 = vmatprep.subr.mxu0 %v74
    %120 = vmatpush1.msra.mxu0 %v73
    %121 = vmatprep.subr.mxu0 %v72
    %122 = vmatpush1.msra.mxu0 %v71
    %123 = vmatprep.subr.mxu0 %v70
    %124 = vmatpush1.msra.mxu0 %v69
    %125 = vmatprep.subr.mxu0 %v68
    %126 = vmatpush1.msra.mxu0 %v67
    %127 = vmatprep.subr.mxu0 0.0
    %128 = vmatpush2.msra.mxu0 0.0
    %129 = vmatprep.subr.mxu0 0.0
    %130 = vmatpush2.msra.mxu0 0.0
    %131 = vmatprep.subr.mxu0 0.0
    %132 = vmatpush2.msra.mxu0 0.0
    %133 = vmatprep.subr.mxu0 0.0
    %134 = vmatpush2.msra.mxu0 0.0
    %135 = vmatprep.subr.mxu0 0.0
    %136 = vmatpush2.msra.mxu0 0.0
    %137 = vmatprep.subr.mxu0 0.0
    %138 = vmatpush2.msra.mxu0 0.0
    %139 = vmatprep.subr.mxu0 0.0
    %140 = vmatpush2.msra.mxu0 0.0
    %141 = vmatprep.subr.mxu0 0.0
    %142 = vmatpush2.msra.mxu0 0.0
    %143 = vmatprep.subr.mxu0 0.0
    %144 = vmatpush2.msra.mxu0 0.0
    %145 = vmatprep.subr.mxu0 0.0
    %146 = vmatpush2.msra.mxu0 0.0
    %147 = vmatprep.subr.mxu0 0.0
    %148 = vmatpush2.msra.mxu0 0.0
    %149 = vmatprep.subr.mxu0 0.0
    %150 = vmatpush2.msra.mxu0 0.0
    %151 = vmatprep.subr.mxu0 0.0
    %152 = vmatpush2.msra.mxu0 0.0
    %153 = vmatprep.subr.mxu0 0.0
    %154 = vmatpush2.msra.mxu0 0.0
    %155 = vmatprep.subr.mxu0 0.0
    %156 = vmatpush2.msra.mxu0 0.0
    %157 = vmatprep.subr.mxu0 0.0
    %158 = vmatpush2.msra.mxu0 0.0
    %159 = vmatprep.mubr.f32.mxu0 0.0
    %160 = vmatmul.mubr.f32.gmra.mxu0 %v88
    %v161 = vpop.f32.mrf.mxu0
    %v162 = vadd.f32 %v80, %v161
    %v163 = vpop.f32.mrf.mxu0
    %v164 = vadd.f32 %v84, %v163
    %165 = vmatprep.mubr.f32.mxu0 0.0
    %166 = vmatmul.mubr.f32.gmra.mxu0 %v91
    %v167 = vpop.f32.mrf.mxu0
    %v168 = vadd.f32 %v80, %v167
    %v169 = vpop.f32.mrf.mxu0
    %v170 = vadd.f32 %v84, %v169
    %171 = vmatprep.mubr.f32.mxu0 0.0
    %172 = vmatmul.mubr.f32.gmra.mxu0 %v93
    %v173 = vpop.f32.mrf.mxu0
    %v174 = vadd.f32 %v80, %v173
    %v175 = vpop.f32.mrf.mxu0
    %176 = vdwg.mxu0
    %v177 = vmul.f32 %v174, 0.125
    %v180 = vunpack.c.l.s4 1966171168
    %v181 = vunpack.c.0.s8 %v180
    %v182 = vlaneseq
    %v183 = vshrl.u32 %v182, 7
    %v184 = vsub.s32 %v181, %v183
    %v185 = vrot.slane %v177, %v184
    %v186 = vcombine.high %v185, %v185
    %v188 = vunpack.c.l.s4 1966171168
    %v189 = vunpack.c.0.s8 %v188
    %v190 = vlaneseq
    %v191 = vshrl.u32 %v190, 7
    %v192 = vsub.s32 %v189, %v191
    %v193 = vrot.slane %v185, %v192
    %v195 = vunpack.c.l.s4 1966171168
    %v196 = vunpack.c.0.s8 %v195
    %v197 = vlaneseq
    %v198 = vshrl.u32 %v197, 7
    %v199 = vsub.s32 %v196, %v198
    %v200 = vrot.slane %v186, %v199
    %v201 = vlaneseq
    %v202 = vshrl.u32 %v201, 7
    %v203 = vsub.s32 0, %v202
    %v204 = vrot.slane %v193, %v203
    %v205 = vlaneseq
    %v206 = vshrl.u32 %v205, 7
    %v207 = vsub.s32 0, %v206
    %v208 = vrot.slane %v200, %v207
    %213 = vrot.lane.b32.xlu0 %v162, 64
    %v214 = vpop.permute.xlu0 %213
    %215 = vrot.lane.b32.xlu0 %v168, 64
    %v216 = vpop.permute.xlu0 %215
    %v219 = vmul.f32 %v204, %v214
    %v220 = vmul.f32 %v208, %v216
    %vm221 = vcmask 523264
    %v222 = vsel %vm221, %v219, 0.0
    %223 = vadd.xlane.f32.xlu0 %v222
    %v224 = vpop.xlane.xlu0 %223
    %v225 = vsel %vm221, %v220, 0.0
    %226 = vadd.xlane.f32.xlu0 %v225
    %v227 = vpop.xlane.xlu0 %226
    %v230 = vlaneseq
    %v231 = vand.u32 %v230, 127
    %v232 = vlaneseq
    %v233 = vshrl.u32 %v232, 7
    %v234 = vsub.s32 %v231, %v233
    %v235 = vrot.slane %v224, %v234
    %v236 = vlaneseq
    %v237 = vshrl.u32 %v236, 7
    %v238 = vsub.s32 %v231, %v237
    %v239 = vrot.slane %v227, %v238
    %v240 = vsel %vm65, %v239, %v235
    %vm242 = vcmask 58368
    %v243 = vsel %vm242, %v240, -inf
    %244 = vmax.xlane.f32.xlu0 %v243
    %v245 = vpop.xlane.xlu0 %244
    %v247 = vlaneseq
    %v248 = vshrl.u32 %v247, 7
    %v249 = vsub.s32 0, %v248
    %v250 = vrot.slane %v245, %v249
    %v251 = vlaneseq
    %v252 = vshrl.u32 %v251, 7
    %v253 = vsub.s32 1, %v252
    %v254 = vrot.slane %v245, %v253
    %v257 = vsub.f32 %v224, %v250
    %v258 = vsub.f32 %v227, %v254
    %v259 = vmul.f32 %v257, 1.442695
    %v260 = vpow.pop %v259
    %v261 = vmul.f32 %v258, 1.442695
    %v262 = vpow.pop %v261
    %265 = vset.pattern.permute.xlu0 0
    %266 = vperm.xlu0 %265, %v260
    %v267 = vpop.permute.xlu0 %266
    %268 = vset.pattern.permute.xlu0 0
    %269 = vperm.xlu0 %268, %v262
    %v270 = vpop.permute.xlu0 %269
    %v271 = vlaneseq
    %v272 = vshrl.u32 %v271, 7
    %v273 = vsub.s32 %v231, %v272
    %v274 = vrot.slane %v267, %v273
    %v275 = vlaneseq
    %v276 = vshrl.u32 %v275, 7
    %v277 = vsub.s32 %v231, %v276
    %v278 = vrot.slane %v270, %v277
    %v279 = vsel %vm65, %v278, %v274
    %v281 = vsel %vm242, %v279, 0.0
    %282 = vadd.xlane.f32.xlu0 %v281
    %v283 = vpop.xlane.xlu0 %282
    %v284 = vrcp.pop %v283
    %v286 = vlaneseq
    %v287 = vshrl.u32 %v286, 7
    %v288 = vsub.s32 0, %v287
    %v289 = vrot.slane %v284, %v288
    %v290 = vlaneseq
    %v291 = vshrl.u32 %v290, 7
    %v292 = vsub.s32 1, %v291
    %v293 = vrot.slane %v284, %v292
    %v296 = vmul.f32 %v260, %v289
    %v297 = vmul.f32 %v262, %v293
    %298 = vxpose.xlu0.b32.start [1/16] %v164, 128
    %299 = vxpose.xlu0.b32.cont [2/16] 0.0, 128
    %300 = vxpose.xlu0.b32.cont [3/16] 0.0, 128
    %301 = vxpose.xlu0.b32.cont [4/16] 0.0, 128
    %302 = vxpose.xlu0.b32.cont [5/16] 0.0, 128
    %303 = vxpose.xlu0.b32.cont [6/16] 0.0, 128
    %304 = vxpose.xlu0.b32.cont [7/16] 0.0, 128
    %305 = vxpose.xlu0.b32.cont [8/16] 0.0, 128
    %306 = vxpose.xlu0.b32.cont [9/16] 0.0, 128
    %307 = vxpose.xlu0.b32.cont [10/16] 0.0, 128
    %308 = vxpose.xlu0.b32.cont [11/16] 0.0, 128
    %309 = vxpose.xlu0.b32.cont [12/16] 0.0, 128
    %310 = vxpose.xlu0.b32.cont [13/16] 0.0, 128
    %311 = vxpose.xlu0.b32.cont [14/16] 0.0, 128
    %312 = vxpose.xlu0.b32.cont [15/16] 0.0, 128
    %313 = vxpose.xlu0.b32.end [16/16] 0.0, 128
    %v314 = vpop.trf.xlu0
    %v315 = vpop.trf.xlu0
    %v316 = vpop.trf.xlu0
    %v317 = vpop.trf.xlu0
    %v318 = vpop.trf.xlu0
    %v319 = vpop.trf.xlu0
    %v320 = vpop.trf.xlu0
    %v321 = vpop.trf.xlu0
    %v322 = vpop.trf.xlu0
    %v323 = vpop.trf.xlu0
    %v324 = vpop.trf.xlu0
    %v325 = vpop.trf.xlu0
    %v326 = vpop.trf.xlu0
    %v327 = vpop.trf.xlu0
    %v328 = vpop.trf.xlu0
    %v329 = vpop.trf.xlu0
    %330 = vxpose.xlu0.b32.start [1/16] %v170, 128
    %331 = vxpose.xlu0.b32.cont [2/16] 0.0, 128
    %332 = vxpose.xlu0.b32.cont [3/16] 0.0, 128
    %333 = vxpose.xlu0.b32.cont [4/16] 0.0, 128
    %334 = vxpose.xlu0.b32.cont [5/16] 0.0, 128
    %335 = vxpose.xlu0.b32.cont [6/16] 0.0, 128
    %336 = vxpose.xlu0.b32.cont [7/16] 0.0, 128
    %337 = vxpose.xlu0.b32.cont [8/16] 0.0, 128
    %338 = vxpose.xlu0.b32.cont [9/16] 0.0, 128
    %339 = vxpose.xlu0.b32.cont [10/16] 0.0, 128
    %340 = vxpose.xlu0.b32.cont [11/16] 0.0, 128
    %341 = vxpose.xlu0.b32.cont [12/16] 0.0, 128
    %342 = vxpose.xlu0.b32.cont [13/16] 0.0, 128
    %343 = vxpose.xlu0.b32.cont [14/16] 0.0, 128
    %344 = vxpose.xlu0.b32.cont [15/16] 0.0, 128
    %345 = vxpose.xlu0.b32.end [16/16] 0.0, 128
    %v346 = vpop.trf.xlu0
    %v347 = vpop.trf.xlu0
    %v348 = vpop.trf.xlu0
    %v349 = vpop.trf.xlu0
    %v350 = vpop.trf.xlu0
    %v351 = vpop.trf.xlu0
    %v352 = vpop.trf.xlu0
    %v353 = vpop.trf.xlu0
    %v354 = vpop.trf.xlu0
    %v355 = vpop.trf.xlu0
    %v356 = vpop.trf.xlu0
    %v357 = vpop.trf.xlu0
    %v358 = vpop.trf.xlu0
    %v359 = vpop.trf.xlu0
    %v360 = vpop.trf.xlu0
    %v361 = vpop.trf.xlu0
    %364 = vset.pattern.permute.xlu0 0
    %365 = vperm.xlu0 %364, %v296
    %v366 = vpop.permute.xlu0 %365
    %367 = vset.pattern.permute.xlu0 0
    %368 = vperm.xlu0 %367, %v297
    %v369 = vpop.permute.xlu0 %368
    %v370 = vlaneseq
    %v371 = vshrl.u32 %v370, 7
    %v372 = vsub.s32 %v231, %v371
    %v373 = vrot.slane %v366, %v372
    %v374 = vlaneseq
    %v375 = vshrl.u32 %v374, 7
    %v376 = vsub.s32 %v231, %v375
    %v377 = vrot.slane %v369, %v376
    %v378 = vsel %vm65, %v377, %v373
    %vm379 = vcmask 64512
    %v381 = vsel %vm379, %v314, 0
    %v384 = vsel %vm379, %v315, 0
    %v387 = vsel %vm379, %v316, 0
    %v390 = vsel %vm379, %v317, 0
    %v393 = vsel %vm379, %v318, 0
    %v396 = vsel %vm379, %v319, 0
    %v399 = vsel %vm379, %v320, 0
    %v402 = vsel %vm379, %v321, 0
    %v405 = vsel %vm379, %v346, 0
    %v408 = vsel %vm379, %v347, 0
    %v411 = vsel %vm379, %v348, 0
    %v414 = vsel %vm379, %v349, 0
    %v417 = vsel %vm379, %v350, 0
    %v420 = vsel %vm379, %v351, 0
    %v423 = vsel %vm379, %v352, 0
    %v426 = vsel %vm379, %v353, 0
    %v428 = vsel %vm379, %v378, 0
    %430 = vmatprep.subr.mxu0 0.0
    %431 = vmatpush1.xpose.msra.mxu0 0.0
    %432 = vmatprep.subr.mxu0 0.0
    %433 = vmatpush1.xpose.msra.mxu0 0.0
    %434 = vmatprep.subr.mxu0 0.0
    %435 = vmatpush1.xpose.msra.mxu0 0.0
    %436 = vmatprep.subr.mxu0 0.0
    %437 = vmatpush1.xpose.msra.mxu0 0.0
    %438 = vmatprep.subr.mxu0 0.0
    %439 = vmatpush1.xpose.msra.mxu0 0.0
    %440 = vmatprep.subr.mxu0 0.0
    %441 = vmatpush1.xpose.msra.mxu0 0.0
    %442 = vmatprep.subr.mxu0 0.0
    %443 = vmatpush1.xpose.msra.mxu0 0.0
    %444 = vmatprep.subr.mxu0 0.0
    %445 = vmatpush1.xpose.msra.mxu0 0.0
    %446 = vmatprep.subr.mxu0 0.0
    %447 = vmatpush1.xpose.msra.mxu0 0.0
    %448 = vmatprep.subr.mxu0 0.0
    %449 = vmatpush1.xpose.msra.mxu0 0.0
    %450 = vmatprep.subr.mxu0 0.0
    %451 = vmatpush1.xpose.msra.mxu0 0.0
    %452 = vmatprep.subr.mxu0 0.0
    %453 = vmatpush1.xpose.msra.mxu0 0.0
    %454 = vmatprep.subr.mxu0 0.0
    %455 = vmatpush1.xpose.msra.mxu0 0.0
    %456 = vmatprep.subr.mxu0 0.0
    %457 = vmatpush1.xpose.msra.mxu0 0.0
    %458 = vmatprep.subr.mxu0 0.0
    %459 = vmatpush1.xpose.msra.mxu0 0.0
    %460 = vmatprep.subr.mxu0 0.0
    %461 = vmatpush1.xpose.msra.mxu0 %v428
    %462 = vmatprep.subr.mxu0 0.0
    %463 = vmatpush2.xpose.msra.mxu0 0.0
    %464 = vmatprep.subr.mxu0 0.0
    %465 = vmatpush2.xpose.msra.mxu0 0.0
    %466 = vmatprep.subr.mxu0 0.0
    %467 = vmatpush2.xpose.msra.mxu0 0.0
    %468 = vmatprep.subr.mxu0 0.0
    %469 = vmatpush2.xpose.msra.mxu0 0.0
    %470 = vmatprep.subr.mxu0 0.0
    %471 = vmatpush2.xpose.msra.mxu0 0.0
    %472 = vmatprep.subr.mxu0 0.0
    %473 = vmatpush2.xpose.msra.mxu0 0.0
    %474 = vmatprep.subr.mxu0 0.0
    %475 = vmatpush2.xpose.msra.mxu0 0.0
    %476 = vmatprep.subr.mxu0 0.0
    %477 = vmatpush2.xpose.msra.mxu0 0.0
    %478 = vmatprep.subr.mxu0 0.0
    %479 = vmatpush2.xpose.msra.mxu0 0.0
    %480 = vmatprep.subr.mxu0 0.0
    %481 = vmatpush2.xpose.msra.mxu0 0.0
    %482 = vmatprep.subr.mxu0 0.0
    %483 = vmatpush2.xpose.msra.mxu0 0.0
    %484 = vmatprep.subr.mxu0 0.0
    %485 = vmatpush2.xpose.msra.mxu0 0.0
    %486 = vmatprep.subr.mxu0 0.0
    %487 = vmatpush2.xpose.msra.mxu0 0.0
    %488 = vmatprep.subr.mxu0 0.0
    %489 = vmatpush2.xpose.msra.mxu0 0.0
    %490 = vmatprep.subr.mxu0 0.0
    %491 = vmatpush2.xpose.msra.mxu0 0.0
    %492 = vmatprep.subr.mxu0 0.0
    %493 = vmatpush2.xpose.msra.mxu0 0.0
    %494 = vmatprep.mubr.f32.mxu0 0.0
    %495 = vmatmul.mubr.f32.gmra.mxu0 %v381
    %v496 = vpop.f32.mrf.mxu0
    %v497 = vadd.f32 0.0, %v496
    %v498 = vpop.f32.mrf.mxu0
    %499 = vmatprep.mubr.f32.mxu0 0.0
    %500 = vmatmul.mubr.f32.gmra.mxu0 %v384
    %v501 = vpop.f32.mrf.mxu0
    %v502 = vadd.f32 0.0, %v501
    %v503 = vpop.f32.mrf.mxu0
    %504 = vmatprep.mubr.f32.mxu0 0.0
    %505 = vmatmul.mubr.f32.gmra.mxu0 %v387
    %v506 = vpop.f32.mrf.mxu0
    %v507 = vadd.f32 0.0, %v506
    %v508 = vpop.f32.mrf.mxu0
    %509 = vmatprep.mubr.f32.mxu0 0.0
    %510 = vmatmul.mubr.f32.gmra.mxu0 %v390
    %v511 = vpop.f32.mrf.mxu0
    %v512 = vadd.f32 0.0, %v511
    %v513 = vpop.f32.mrf.mxu0
    %514 = vmatprep.mubr.f32.mxu0 0.0
    %515 = vmatmul.mubr.f32.gmra.mxu0 %v393
    %v516 = vpop.f32.mrf.mxu0
    %v517 = vadd.f32 0.0, %v516
    %v518 = vpop.f32.mrf.mxu0
    %519 = vmatprep.mubr.f32.mxu0 0.0
    %520 = vmatmul.mubr.f32.gmra.mxu0 %v396
    %v521 = vpop.f32.mrf.mxu0
    %v522 = vadd.f32 0.0, %v521
    %v523 = vpop.f32.mrf.mxu0
    %524 = vmatprep.mubr.f32.mxu0 0.0
    %525 = vmatmul.mubr.f32.gmra.mxu0 %v399
    %v526 = vpop.f32.mrf.mxu0
    %v527 = vadd.f32 0.0, %v526
    %v528 = vpop.f32.mrf.mxu0
    %529 = vmatprep.mubr.f32.mxu0 0.0
    %530 = vmatmul.mubr.f32.gmra.mxu0 %v402
    %v531 = vpop.f32.mrf.mxu0
    %v532 = vadd.f32 0.0, %v531
    %v533 = vpop.f32.mrf.mxu0
    %534 = vmatprep.mubr.f32.mxu0 0.0
    %535 = vmatmul.mubr.f32.gmra.mxu0 %v405
    %v536 = vpop.f32.mrf.mxu0
    %v537 = vadd.f32 0.0, %v536
    %v538 = vpop.f32.mrf.mxu0
    %539 = vmatprep.mubr.f32.mxu0 0.0
    %540 = vmatmul.mubr.f32.gmra.mxu0 %v408
    %v541 = vpop.f32.mrf.mxu0
    %v542 = vadd.f32 0.0, %v541
    %v543 = vpop.f32.mrf.mxu0
    %544 = vmatprep.mubr.f32.mxu0 0.0
    %545 = vmatmul.mubr.f32.gmra.mxu0 %v411
    %v546 = vpop.f32.mrf.mxu0
    %v547 = vadd.f32 0.0, %v546
    %v548 = vpop.f32.mrf.mxu0
    %549 = vmatprep.mubr.f32.mxu0 0.0
    %550 = vmatmul.mubr.f32.gmra.mxu0 %v414
    %v551 = vpop.f32.mrf.mxu0
    %v552 = vadd.f32 0.0, %v551
    %v553 = vpop.f32.mrf.mxu0
    %554 = vmatprep.mubr.f32.mxu0 0.0
    %555 = vmatmul.mubr.f32.gmra.mxu0 %v417
    %v556 = vpop.f32.mrf.mxu0
    %v557 = vadd.f32 0.0, %v556
    %v558 = vpop.f32.mrf.mxu0
    %559 = vmatprep.mubr.f32.mxu0 0.0
    %560 = vmatmul.mubr.f32.gmra.mxu0 %v420
    %v561 = vpop.f32.mrf.mxu0
    %v562 = vadd.f32 0.0, %v561
    %v563 = vpop.f32.mrf.mxu0
    %564 = vmatprep.mubr.f32.mxu0 0.0
    %565 = vmatmul.mubr.f32.gmra.mxu0 %v423
    %v566 = vpop.f32.mrf.mxu0
    %v567 = vadd.f32 0.0, %v566
    %v568 = vpop.f32.mrf.mxu0
    %569 = vmatprep.mubr.f32.mxu0 0.0
    %570 = vmatmul.mubr.f32.gmra.mxu0 %v426
    %v571 = vpop.f32.mrf.mxu0
    %v572 = vadd.f32 0.0, %v571
    %v573 = vpop.f32.mrf.mxu0
    %574 = vdwg.mxu0
    %575 = vxpose.xlu0.b32.start [1/16] %v497, 128
    %576 = vxpose.xlu0.b32.cont [2/16] %v502, 128
    %577 = vxpose.xlu0.b32.cont [3/16] %v507, 128
    %578 = vxpose.xlu0.b32.cont [4/16] %v512, 128
    %579 = vxpose.xlu0.b32.cont [5/16] %v517, 128
    %580 = vxpose.xlu0.b32.cont [6/16] %v522, 128
    %581 = vxpose.xlu0.b32.cont [7/16] %v527, 128
    %582 = vxpose.xlu0.b32.cont [8/16] %v532, 128
    %583 = vxpose.xlu0.b32.cont [9/16] 0.0, 128
    %584 = vxpose.xlu0.b32.cont [10/16] 0.0, 128
    %585 = vxpose.xlu0.b32.cont [11/16] 0.0, 128
    %586 = vxpose.xlu0.b32.cont [12/16] 0.0, 128
    %587 = vxpose.xlu0.b32.cont [13/16] 0.0, 128
    %588 = vxpose.xlu0.b32.cont [14/16] 0.0, 128
    %589 = vxpose.xlu0.b32.cont [15/16] 0.0, 128
    %590 = vxpose.xlu0.b32.end [16/16] 0.0, 128
    %v591 = vpop.trf.xlu0
    %v592 = vpop.trf.xlu0
    %v593 = vpop.trf.xlu0
    %v594 = vpop.trf.xlu0
    %v595 = vpop.trf.xlu0
    %v596 = vpop.trf.xlu0
    %v597 = vpop.trf.xlu0
    %v598 = vpop.trf.xlu0
    %v599 = vpop.trf.xlu0
    %v600 = vpop.trf.xlu0
    %v601 = vpop.trf.xlu0
    %v602 = vpop.trf.xlu0
    %v603 = vpop.trf.xlu0
    %v604 = vpop.trf.xlu0
    %v605 = vpop.trf.xlu0
    %v606 = vpop.trf.xlu0
    %607 = vxpose.xlu0.b32.start [1/16] %v537, 128
    %608 = vxpose.xlu0.b32.cont [2/16] %v542, 128
    %609 = vxpose.xlu0.b32.cont [3/16] %v547, 128
    %610 = vxpose.xlu0.b32.cont [4/16] %v552, 128
    %611 = vxpose.xlu0.b32.cont [5/16] %v557, 128
    %612 = vxpose.xlu0.b32.cont [6/16] %v562, 128
    %613 = vxpose.xlu0.b32.cont [7/16] %v567, 128
    %614 = vxpose.xlu0.b32.cont [8/16] %v572, 128
    %615 = vxpose.xlu0.b32.cont [9/16] 0.0, 128
    %616 = vxpose.xlu0.b32.cont [10/16] 0.0, 128
    %617 = vxpose.xlu0.b32.cont [11/16] 0.0, 128
    %618 = vxpose.xlu0.b32.cont [12/16] 0.0, 128
    %619 = vxpose.xlu0.b32.cont [13/16] 0.0, 128
    %620 = vxpose.xlu0.b32.cont [14/16] 0.0, 128
    %621 = vxpose.xlu0.b32.cont [15/16] 0.0, 128
    %622 = vxpose.xlu0.b32.end [16/16] 0.0, 128
    %v623 = vpop.trf.xlu0
    %v624 = vpop.trf.xlu0
    %v625 = vpop.trf.xlu0
    %v626 = vpop.trf.xlu0
    %v627 = vpop.trf.xlu0
    %v628 = vpop.trf.xlu0
    %v629 = vpop.trf.xlu0
    %v630 = vpop.trf.xlu0
    %v631 = vpop.trf.xlu0
    %v632 = vpop.trf.xlu0
    %v633 = vpop.trf.xlu0
    %v634 = vpop.trf.xlu0
    %v635 = vpop.trf.xlu0
    %v636 = vpop.trf.xlu0
    %v637 = vpop.trf.xlu0
    %v638 = vpop.trf.xlu0
    %v641 = vrot.slane %v623, 7
    %v642 = vsel %vm65, %v641, %v591
    %v644 = vrot.slane %v591, 1
    %v645 = vsel %vm65, %v623, %v644
    %646 = vrot.lane.b32.xlu0 %v645, 64
    %v647 = vpop.permute.xlu0 %646
    %v649 = vsel %vm221, %v642, %v647
    %v651 = vsel %vm379, %v378, 0.0
    %v654 = vcombine.low %v649, %v651
    %v656 = vunpack.c.l.s4 1983009808
    %v657 = vunpack.c.0.s8 %v656
    %v658 = vlaneseq
    %v659 = vshrl.u32 %v658, 7
    %v660 = vsub.s32 %v657, %v659
    %v661 = vrot.slane %v654, %v660
    %663 = vst [vmem:[#allocation7] sm:$0xf] %v661
    // Predicated region
    $region22: #{tpu_custom_call.1} parent=1 // pred_check
      _
    $region23: #{tpu_custom_call.1} parent=1 // pred_check_branch
      %665 = sbr.rel (0) target = $region25
    $region24: #{tpu_custom_call.1} parent=1 // pred_region
      %s667 = ssub.s32 64, 64
      %668 = vsyncadd [#allocation4], %s667
      %s670 = sshll.u32 [#allocation7], 4
      %s671 = int_to_ptr.vmem [resolvable:$true] %s670
      %673 = dma.vmem_to_hbm [thread:$0]  %s671, 64, %s3, [#allocation4]
    $region25: #{tpu_custom_call.1} parent=1 // pred_fallthru
      _
    // Predicated region
    $region26: #{tpu_custom_call.1} parent=1 // pred_check
      _
    $region27: #{tpu_custom_call.1} parent=1 // pred_check_branch
      %675 = sbr.rel (0) target = $region29
    $region28: #{tpu_custom_call.1} parent=1 // pred_region
      %676 = dma.done [#allocation4], 64
    $region29: #{tpu_custom_call.1} parent=1 // pred_fallthru
      _
    %677 = vsyncpa [#allocation3], 1
    %678 = vsyncpa [#allocation6], 1
    %679 = vsyncpa [#allocation4], 1

</llo_original>
